<compile_context>
chip_gen: v5e
topology: v5e:2x2
jax: 0.10.0
libtpu: 0.0.40
codegen_flags: <defaults>
</compile_context>

<pallas_src>
import functools

import jax
import jax.numpy as jnp
from jax import lax
from jax.experimental import pallas as pl
from jax.experimental.pallas import tpu as pltpu

_LANES = 128
_TILE_ROWS = 4096                       # rows / grid step -> 2 MiB per input per step (f32)
_TILE_ELEMS = _TILE_ROWS * _LANES
_ACC_ROWS = 512                         # resident accumulator rows (decoupled from tile size)
_SINGLE_MAX_ELEMS = _TILE_ELEMS         # <= one tile: single-block path (no grid)
_SINGLE_MAX_PADDED_BYTES = 4 * 1024 * 1024


def _focal_epilogue(mean_bce, alpha, gamma):
    """Scalar focal transform applied to the scalar mean BCE (matches PyTorch)."""
    pt = jnp.exp(-mean_bce)
    omp = 1.0 - pt
    g = float(gamma)
    if g == int(g) and 0 <= int(g) <= 4:
        # Integer gamma (default gamma=2): repeated multiply, no pow (EUP log+exp).
        mod = jnp.float32(1.0)
        for _ in range(int(g)):
            mod = mod * omp
    else:
        mod = omp ** jnp.float32(g)
    return jnp.float32(alpha) * mod * mean_bce


def _bce_elementwise(x, t):
    """Numerically-stable binary_cross_entropy_with_logits, elementwise f32."""
    # TODO(synk): on v7x (~3.2 TB/s HBM/TC) the 2 EUP transcendentals/element
    # (exp + log1p) may become the saturating unit; if a bundle dump confirms
    # it, replace log1p with a short VPU polynomial (argument exp(-|x|) in
    # (0,1] is well-conditioned).
    return jnp.maximum(x, 0.0) - x * t + jnp.log1p(jnp.exp(-jnp.abs(x)))


# --------------------------------------------------------------------------- #
# Single-block path (small inputs, e.g. the detector's 2x4x16x16 heatmap).
# --------------------------------------------------------------------------- #
def _focal_single_kernel(x_ref, t_ref, o_ref, *, n_valid, alpha, gamma, needs_mask):
    x = x_ref[...].astype(jnp.float32)
    t = t_ref[...].astype(jnp.float32)
    bce = _bce_elementwise(x, t)
    if needs_mask:
        # Only reached when the wrapper had to zero-pad the flattened input to
        # whole 128-lane rows; padded slots give bce = log(2) and must be
        # excluded.  Flat index here is < _TILE_ELEMS, so no i32 overflow.
        rows, lanes = bce.shape
        flat = (
            lax.broadcasted_iota(jnp.int32, (rows, lanes), 0) * lanes
            + lax.broadcasted_iota(jnp.int32, (rows, lanes), 1)
        )
        bce = jnp.where(flat < n_valid, bce, 0.0)
    mean_bce = jnp.sum(bce) / jnp.float32(n_valid)
    o_ref[0, 0] = _focal_epilogue(mean_bce, alpha, gamma)


# --------------------------------------------------------------------------- #
# Tiled path (large inputs): pure HBM-streaming reduce.
# --------------------------------------------------------------------------- #
def _focal_tiled_kernel(
    x_ref, t_ref, acc_ref, *, steps_per_split, total_blocks, rem_last, has_overhang
):
    c = pl.program_id(0)             # TensorCore split ("parallel")
    j = pl.program_id(1)             # streaming step within split ("arbitrary")
    g = c * steps_per_split + j      # global tile index (block-index math only)

    @pl.when(j == 0)
    def _init():
        acc_ref[...] = jnp.zeros_like(acc_ref)

    x = x_ref[...].astype(jnp.float32)
    t = t_ref[...].astype(jnp.float32)
    bce = _bce_elementwise(x, t)

    def fold(v):
        # (TILE_ROWS,128) -> (ACC_ROWS,128): pure VPU adds (no cross-lane work),
        # keeps the resident accumulator small regardless of the tile size.
        return jnp.sum(v.reshape(_TILE_ROWS // _ACC_ROWS, _ACC_ROWS, _LANES), axis=0)

    last_real = total_blocks - 1
    if rem_last is not None:
        # Full tiles: unmasked accumulate (cheapest path).
        @pl.when(g < last_real)
        def _full():
            acc_ref[...] += fold(bce)

        # Final REAL tile only: mask the ragged tail (partial rows / padded
        # lanes).  rem_last is a Python int <= _TILE_ELEMS -> no i32 overflow.
        @pl.when(g == last_real)
        def _tail():
            flat = (
                lax.broadcasted_iota(jnp.int32, bce.shape, 0) * _LANES
                + lax.broadcasted_iota(jnp.int32, bce.shape, 1)
            )
            acc_ref[...] += fold(jnp.where(flat < rem_last, bce, 0.0))
        # g > last_real: overhang tile of the parallel split -> contributes 0.
    elif has_overhang:
        @pl.when(g <= last_real)
        def _maybe():
            acc_ref[...] += fold(bce)
    else:
        acc_ref[...] += fold(bce)


def _padded_vmem_bytes(shape, itemsize):
    """Approximate VMEM footprint of one array after (8,128) layout padding."""
    if len(shape) == 0:
        return 8 * _LANES * itemsize
    if len(shape) == 1:
        return 8 * pl.cdiv(shape[0], _LANES) * _LANES * itemsize
    lead = 1
    for d in shape[:-2]:
        lead *= int(d)
    sub = pl.cdiv(int(shape[-2]), 8) * 8
    lane = pl.cdiv(int(shape[-1]), _LANES) * _LANES
    return lead * sub * lane * itemsize


def _tc_splits(total_blocks):
    """Leading 'parallel' grid-axis size (TensorCore split) for the tiled path.

    v7x has 2 TensorCores per chip; a leading parallel axis lets Mosaic shard
    this HBM-streaming reduce across both (up to ~2x on large inputs).  On
    1-TC chips (v5e/v6e) the split costs nothing when the tile count divides
    evenly and at most one re-read tile otherwise, so it is enabled when the
    hardware reports >1 core or when it is provably free.
    """
    if total_blocks < 4:
        return 1
    cores = 1
    try:  # Best-effort HW query; attribute names differ across JAX versions.
        info = pltpu.get_tpu_info()
        for name in ("num_cores", "core_count", "cores_per_chip", "num_tensorcores"):
            value = getattr(info, name, None)
            if isinstance(value, int) and value > 0:
                cores = value
                break
    except Exception:
        cores = 1
    if cores >= 2:
        return 2
    return 2 if total_blocks % 2 == 0 else 1


def focal_loss(inputs, targets, alpha=1.0, gamma=2.0):
    """Focal loss matching the PyTorch module's forward. Returns a scalar f32.

    Inputs may be f32 or bf16 (the kernel upcasts internally); passing bf16
    logits / 0-1 targets halves HBM traffic for this memory-bound reduce.
    """
    assert inputs.shape == targets.shape
    n = int(inputs.size)
    alpha = float(alpha)
    gamma = float(gamma)

    # ---------------- small inputs: single block, no grid / no pipeline ------
    if n <= _SINGLE_MAX_ELEMS:
        needs_mask = False
        if n % _LANES == 0:
            # Free bitcast to a lane-dense (rows, 128) block: no pad, no mask.
            x2 = inputs.reshape(n // _LANES, _LANES)
            t2 = targets.reshape(n // _LANES, _LANES)
        elif (
            inputs.ndim >= 2
            and _padded_vmem_bytes(inputs.shape, 4) <= _SINGLE_MAX_PADDED_BYTES
        ):
            # Ragged element count: keep the original shape (full-array block),
            # so neither padding nor masking is needed.
            x2, t2 = inputs, targets
        else:
            # Rare lane-sparse / 1-D ragged shape: pad the flat tail to whole
            # 128-lane rows (tiny copy at these sizes) and mask it in-kernel.
            rows = pl.cdiv(n, _LANES)
            pad = rows * _LANES - n
            x2 = jnp.pad(inputs.reshape(-1), (0, pad)).reshape(rows, _LANES)
            t2 = jnp.pad(targets.reshape(-1), (0, pad)).reshape(rows, _LANES)
            needs_mask = True

        kernel = functools.partial(
            _focal_single_kernel,
            n_valid=n,
            alpha=alpha,
            gamma=gamma,
            needs_mask=needs_mask,
        )
        out = pl.pallas_call(
            kernel,
            out_shape=jax.ShapeDtypeStruct((1, 1), jnp.float32),
            in_specs=[
                pl.BlockSpec(memory_space=pltpu.MemorySpace.VMEM),
                pl.BlockSpec(memory_space=pltpu.MemorySpace.VMEM),
            ],
            out_specs=pl.BlockSpec(memory_space=pltpu.MemorySpace.SMEM),
        )(x2, t2)
        return out[0, 0]

    # ---------------- large inputs: streaming (4096,128) tiles --------------
    x = inputs.reshape(-1)
    t = targets.reshape(-1)
    rows = pl.cdiv(n, _LANES)
    if rows * _LANES != n:
        # TODO(synk): this pad materializes one extra HBM read+write of both
        # arrays when a LARGE input has n % 128 != 0 (rare for detector
        # heatmaps).  An aligned-main + tiny-tail split would avoid it; the
        # in-kernel mask below stays tied to this padding either way.
        pad = rows * _LANES - n
        x = jnp.pad(x, (0, pad))
        t = jnp.pad(t, (0, pad))
    x2 = x.reshape(rows, _LANES)
    t2 = t.reshape(rows, _LANES)

    total_blocks = pl.cdiv(rows, _TILE_ROWS)        # >= 2 here (n > _TILE_ELEMS)
    num_splits = _tc_splits(total_blocks)
    spc = pl.cdiv(total_blocks, num_splits)         # steps per split
    has_overhang = num_splits * spc > total_blocks
    needs_mask = n != total_blocks * _TILE_ELEMS
    rem_last = (n - (total_blocks - 1) * _TILE_ELEMS) if needs_mask else None

    if has_overhang:
        def in_map(c, j):
            # Clamp virtual overhang tiles onto a real block; the kernel skips
            # their contribution via the g > last_real guard.
            return (jnp.minimum(c * spc + j, total_blocks - 1), 0)
    else:
        def in_map(c, j):
            return (c * spc + j, 0)

    kernel = functools.partial(
        _focal_tiled_kernel,
        steps_per_split=spc,
        total_blocks=total_blocks,
        rem_last=rem_last,
        has_overhang=has_overhang,
    )

    partial_sums = pl.pallas_call(
        kernel,
        out_shape=jax.ShapeDtypeStruct((num_splits * _ACC_ROWS, _LANES), jnp.float32),
        grid=(num_splits, spc),
        in_specs=[
            # TODO(synk): sweep pipeline_mode=pl.Buffered(3) here if xprof
            # shows DMA gaps at step boundaries (costs one extra tile/input).
            pl.BlockSpec((_TILE_ROWS, _LANES), in_map),
            pl.BlockSpec((_TILE_ROWS, _LANES), in_map),
        ],
        # Output block = per-split VMEM accumulator: same block index across
        # the "arbitrary" axis -> stays resident; one block per parallel split.
        out_specs=pl.BlockSpec((_ACC_ROWS, _LANES), lambda c, j: (c, 0)),
        compiler_params=pltpu.CompilerParams(
            dimension_semantics=("parallel", "arbitrary"),
            # ~2 inputs x 2 buffers x 2 MiB + 256 KiB acc (+ f32 temporaries)
            # resident.  Scoped-VMEM default is only 16 MiB on v5e (32 MiB on
            # v6e/v7x); set explicitly so tile-size sweeps do not trip it.
            # Stays well under v7x's 64 MiB physical VMEM per TensorCore.
            vmem_limit_bytes=32 * 1024 * 1024,
        ),
    )(x2, t2)

    # Tiny wrapper epilogue: combine the per-TensorCore partial sums
    # (<= 2 x 512 x 128 f32 values) and apply the scalar focal transform.
    mean_bce = jnp.sum(partial_sums) / jnp.float32(n)
    return _focal_epilogue(mean_bce, alpha, gamma)


def _focal_loss_ref(inputs, targets, alpha=1.0, gamma=2.0):
    x = inputs.astype(jnp.float32)
    t = targets.astype(jnp.float32)
    bce = jnp.mean(jnp.maximum(x, 0.0) - x * t + jnp.log1p(jnp.exp(-jnp.abs(x))))
    pt = jnp.exp(-bce)
    return alpha * (1.0 - pt) ** gamma * bce


if __name__ == "__main__":
    key = jax.random.PRNGKey(0)
    k1, k2 = jax.random.split(key)
    # Detector-style NCHW logits and binary target heatmap.
    inputs = jax.random.normal(k1, (2, 4, 16, 16), dtype=jnp.float32)
    targets = jax.random.bernoulli(k2, p=0.3, shape=(2, 4, 16, 16)).astype(
        jnp.float32
    )

    out = focal_loss(inputs, targets, alpha=1.0, gamma=2.0)
    out = jax.block_until_ready(out)

    ref = _focal_loss_ref(inputs, targets, alpha=1.0, gamma=2.0)
    assert jnp.allclose(out, ref, rtol=1e-5, atol=1e-6), (out, ref)
    print("KERNEL_OK")
</pallas_src>

<mosaic_0001>
module attributes {stable_mosaic.version = 11 : i64} {
  func.func @_focal_single_kernel(%arg0: memref<16x128xf32, #tpu.memory_space<vmem>>, %arg1: memref<16x128xf32, #tpu.memory_space<vmem>>, %arg2: memref<1x1xf32, #tpu.memory_space<smem>>) attributes {dimension_semantics = [], scalar_prefetch = 0 : i64, scratch_operands = 0 : i64, tpu.core_type = #tpu.core_type<tc>} {
    %c0 = arith.constant 0 : index
    %c0_0 = arith.constant 0 : index
    %0 = vector.load %arg0[%c0, %c0_0] : memref<16x128xf32, #tpu.memory_space<vmem>>, vector<16x128xf32>
    %c0_1 = arith.constant 0 : index
    %c0_2 = arith.constant 0 : index
    %1 = vector.load %arg1[%c0_1, %c0_2] : memref<16x128xf32, #tpu.memory_space<vmem>>, vector<16x128xf32>
    %cst = arith.constant 0.000000e+00 : f32
    %2 = vector.broadcast %cst : f32 to vector<16x128xf32>
    %3 = arith.maximumf %0, %2 : vector<16x128xf32>
    %4 = arith.mulf %0, %1 : vector<16x128xf32>
    %5 = arith.subf %3, %4 : vector<16x128xf32>
    %6 = math.absf %0 : vector<16x128xf32>
    %cst_3 = arith.constant 0.000000e+00 : f32
    %7 = vector.broadcast %cst_3 : f32 to vector<16x128xf32>
    %8 = arith.subf %7, %6 : vector<16x128xf32>
    %9 = math.exp %8 : vector<16x128xf32>
    %10 = math.log1p %9 : vector<16x128xf32>
    %11 = arith.addf %5, %10 : vector<16x128xf32>
    %12 = vector.shape_cast %11 : vector<16x128xf32> to vector<1x16x128xf32>
    %cst_4 = arith.constant dense<0.000000e+00> : vector<1xf32>
    %13 = vector.multi_reduction <add>, %12, %cst_4 [1, 2] : vector<1x16x128xf32> to vector<1xf32>
    %14 = vector.shape_cast %13 : vector<1xf32> to vector<1x1x1xf32>
    %15 = vector.extract %14[0, 0, 0] : f32 from vector<1x1x1xf32>
    %cst_5 = arith.constant 2.048000e+03 : f32
    %16 = arith.divf %15, %cst_5 : f32
    %cst_6 = arith.constant 0.000000e+00 : f32
    %17 = arith.subf %cst_6, %16 : f32
    %18 = math.exp %17 : f32
    %cst_7 = arith.constant 1.000000e+00 : f32
    %19 = arith.subf %cst_7, %18 : f32
    %cst_8 = arith.constant 1.000000e+00 : f32
    %20 = arith.mulf %cst_8, %19 : f32
    %21 = arith.mulf %20, %19 : f32
    %cst_9 = arith.constant 1.000000e+00 : f32
    %22 = arith.mulf %cst_9, %21 : f32
    %23 = arith.mulf %22, %16 : f32
    %c0_10 = arith.constant 0 : index
    %c0_11 = arith.constant 0 : index
    %24 = memref.load %arg2[%c0_10, %c0_11] : memref<1x1xf32, #tpu.memory_space<smem>>
    memref.store %23, %arg2[%c0_10, %c0_11] : memref<1x1xf32, #tpu.memory_space<smem>>
    return
  }
}

</mosaic_0001>

<llo_original>
// kernel: tpu_custom_call.1
$region0: #{tpu_custom_call.1}
  #allocation0 [shape = 'u32[]', space=smem, size = 0x4, offset = 0x4, fixed_abs, tag = 'smem constant byte address 0x4 - core index']
  #allocation1 [shape = 'u32[72,128]{1,0:T(1,128)}', space=vmem, size = 0x9000, scoped, tag = 'internal scratch']
  %s0 = inlined_call_operand.hbm [shape: f32[16,128], index: 0, kind: input, shape index: {}]
  %s1 = inlined_call_operand.hbm [shape: f32[16,128], index: 1, kind: input, shape index: {}]
  %s2 = inlined_call_operand.hbm [shape: f32[1,1], index: 2, kind: output, shape index: {}]
  %s3 = sld [smem:[#allocation0]]
  $region26: #{tpu_custom_call.1} parent=0
    _
  %s5 = ssub.s32 1, %s3
  %s6 = scalar_select 0, %s5, %s3
  $region1: #{tpu_custom_call.1} parent=0
    #allocation2 [shape = 'u8[8192]{0}', space=vmem, size = 0x2000, scoped, tag = 'input window, operand 0, single buffered']
    #allocation3 [shape = 's32[1]{0}', space=sflag, size = 0x4, scoped, tag = 'scoped memory for tpu_custom_call.1']
    #allocation4 [shape = 's32[1]{0}', space=sflag, size = 0x4, scoped, tag = 'scoped memory for tpu_custom_call.1']
    #allocation5 [shape = 'u8[8192]{0}', space=vmem, size = 0x2000, scoped, tag = 'input window, operand 1, single buffered']
    #allocation6 [shape = 's32[1]{0}', space=sflag, size = 0x4, scoped, tag = 'scoped memory for tpu_custom_call.1']
    #allocation7 [shape = 'u8[512]{0}', space=smem, size = 0x200, scoped, tag = 'output window, operand 0, single buffered']
    %7 = vsyncpa [#allocation3], 0
    %8 = vsyncpa [#allocation6], 0
    %9 = vsyncpa [#allocation4], 0
    // Predicated region
    $region2: #{tpu_custom_call.1} parent=1 // pred_check
      _
    $region3: #{tpu_custom_call.1} parent=1 // pred_check_branch
      %11 = sbr.rel (0) target = $region5
    $region4: #{tpu_custom_call.1} parent=1 // pred_region
      %13 = vsyncadd [#allocation3], 0
      %s14 = sshll.u32 %s0, 4
      %s15 = int_to_ptr.hbm [resolvable:$true] %s14
      %s16 = sshll.u32 [#allocation2], 4
      %s17 = int_to_ptr.vmem [resolvable:$true] %s16
      %22 = dma.hbm_to_vmem [thread:$0]  %s15, 256, %s17, [#allocation3], 128, 128, 8
    $region5: #{tpu_custom_call.1} parent=1 // pred_fallthru
      _
    // Predicated region
    $region6: #{tpu_custom_call.1} parent=1 // pred_check
      _
    $region7: #{tpu_custom_call.1} parent=1 // pred_check_branch
      %24 = sbr.rel (0) target = $region9
    $region8: #{tpu_custom_call.1} parent=1 // pred_region
      %26 = vsyncadd [#allocation6], 0
      %s27 = sshll.u32 %s1, 4
      %s28 = int_to_ptr.hbm [resolvable:$true] %s27
      %s29 = sshll.u32 [#allocation5], 4
      %s30 = int_to_ptr.vmem [resolvable:$true] %s29
      %35 = dma.hbm_to_vmem [thread:$0]  %s28, 256, %s30, [#allocation6], 128, 128, 8
    $region9: #{tpu_custom_call.1} parent=1 // pred_fallthru
      _
    // Predicated region
    $region10: #{tpu_custom_call.1} parent=1 // pred_check
      _
    $region11: #{tpu_custom_call.1} parent=1 // pred_check_branch
      %37 = sbr.rel (0) target = $region13
    $region12: #{tpu_custom_call.1} parent=1 // pred_region
      %39 = dma.done [#allocation3], 256
    $region13: #{tpu_custom_call.1} parent=1 // pred_fallthru
      _
    // Predicated region
    $region14: #{tpu_custom_call.1} parent=1 // pred_check
      _
    $region15: #{tpu_custom_call.1} parent=1 // pred_check_branch
      %41 = sbr.rel (0) target = $region17
    $region16: #{tpu_custom_call.1} parent=1 // pred_region
      %43 = dma.done [#allocation6], 256
    $region17: #{tpu_custom_call.1} parent=1 // pred_fallthru
      _
    %v44 = vld [vmem:[#allocation2] sm:$0xff]
    %v45 = vld [vmem:[#allocation2 + $0x8] sm:$0xff]
    %v46 = vld [vmem:[#allocation5] sm:$0xff]
    %v47 = vld [vmem:[#allocation5 + $0x8] sm:$0xff]
    %v48 = vmax.f32 %v44, 0.0
    %v49 = vmax.f32 %v45, 0.0
    %v50 = vmul.f32 %v44, %v46
    %v51 = vmul.f32 %v45, %v47
    %v52 = vsub.f32 %v48, %v50
    %v53 = vsub.f32 %v49, %v51
    %v54 = vand.u32 2147483647, %v44
    %v55 = vand.u32 2147483647, %v45
    %v56 = vsub.f32 0.0, %v54
    %v57 = vsub.f32 0.0, %v55
    %v58 = vmul.f32 %v56, 1.442695
    %v59 = vpow.pop %v58
    %v60 = vmul.f32 %v57, 1.442695
    %v61 = vpow.pop %v60
    %v62 = vadd.f32 %v59, 1.0
    %v63 = vlog2.pop %v62
    %v64 = vmul.f32 %v63, 0.6931472
    %v65 = vmul.f32 -0.5, %v59
    %v66 = vadd.f32 %v65, 1.0
    %v67 = vmul.f32 %v66, %v59
    %v68 = vand.u32 2147483647, %v59
    %vm69 = vcmp.lt.f32.partialorder %v68, 0.0004427343
    %v70 = vsel %vm69, %v67, %v64
    %v71 = vadd.f32 %v61, 1.0
    %v72 = vlog2.pop %v71
    %v73 = vmul.f32 %v72, 0.6931472
    %v74 = vmul.f32 -0.5, %v61
    %v75 = vadd.f32 %v74, 1.0
    %v76 = vmul.f32 %v75, %v61
    %v77 = vand.u32 2147483647, %v61
    %vm78 = vcmp.lt.f32.partialorder %v77, 0.0004427343
    %v79 = vsel %vm78, %v76, %v73
    %v80 = vadd.f32 %v52, %v70
    %v81 = vadd.f32 %v53, %v79
    %v82 = vadd.f32 %v80, %v81
    %83 = vadd.xlane.f32.xlu0 %v82
    %v84 = vpop.xlane.xlu0 %83
    %v85 = vrot.slane %v84, 4
    %v86 = vadd.f32 %v84, %v85
    %v87 = vrot.slane %v86, 2
    %v88 = vadd.f32 %v86, %v87
    %v89 = vrot.slane %v88, 1
    %v90 = vadd.f32 %v88, %v89
    %s91 = vtos %v90
    %v92 = vrcp.pop 2048.0
    %v93 = vmul.f32 2048.0, %v92
    %v94 = vsub.f32 1.0, %v93
    %v95 = vmul.f32 %v92, %v94
    %v96 = vadd.f32 %v92, %v95
    %vm97 = vweird.f32 %v92
    %v98 = vsel %vm97, %v92, %v96
    %s99 = vtos %v98
    %s100 = smul.f32 %s91, %s99
    %s101 = ssub.f32 0.0, %s100
    %v102 = vstv %s101
    %v103 = vmul.f32 %v102, 1.442695
    %v104 = vpow.pop %v103
    %s105 = vtos %v104
    %s106 = ssub.f32 1.0, %s105
    %s107 = smul.f32 %s106, %s106
    %s108 = smul.f32 %s107, %s100
    %s109 = scalar_lea.smem [#allocation7], 0
    %110 = sst [smem:[%s109]] %s108
    // Predicated region
    $region18: #{tpu_custom_call.1} parent=1 // pred_check
      _
    $region19: #{tpu_custom_call.1} parent=1 // pred_check_branch
      %112 = sbr.rel (0) target = $region21
    $region20: #{tpu_custom_call.1} parent=1 // pred_region
      %114 = vsyncadd [#allocation4], 0
      %s116 = sshll.u32 %s2, 4
      %s117 = int_to_ptr.hbm [resolvable:$true] %s116
      %119 = dma.smem_to_hbm [#allocation7], 16, %s117, [#allocation4]
    $region21: #{tpu_custom_call.1} parent=1 // pred_fallthru
      _
    // Predicated region
    $region22: #{tpu_custom_call.1} parent=1 // pred_check
      _
    $region23: #{tpu_custom_call.1} parent=1 // pred_check_branch
      %121 = sbr.rel (0) target = $region25
    $region24: #{tpu_custom_call.1} parent=1 // pred_region
      %123 = dma.done [#allocation4], 16
    $region25: #{tpu_custom_call.1} parent=1 // pred_fallthru
      _
    %124 = sfence
    %125 = vsyncpa [#allocation3], 1
    %126 = vsyncpa [#allocation6], 1
    %127 = vsyncpa [#allocation4], 1

</llo_original>
